<compile_context>
chip_gen: v7x
topology: tpu7x:2x2x1
jax: 0.10.0
libtpu: 0.0.40
codegen_flags: <defaults>
</compile_context>

<pallas_src>
import math
from functools import partial

import jax
import jax.numpy as jnp
from jax.experimental import pallas as pl
from jax.experimental.pallas import tpu as pltpu

EPS = 1e-5


def _elementwise_dtype():
    """bf16 im2col on v6e/v7x (native bf16 VPU/XLU); f32 elsewhere.
    v5e has no bf16 vector ALU, so bf16 elementwise there would lower to
    convert-op-convert and regress; cast only at the MXU boundary instead."""
    try:
        kind = jax.devices()[0].device_kind.lower()
    except Exception:
        kind = ""
    if ("v6" in kind) or ("v7" in kind):
        return jnp.bfloat16
    return jnp.float32


# ----------------------------------------------------------------------------
# Pallas kernel: one grid step == Nb batch elements, one MXU contraction.
# ----------------------------------------------------------------------------
def mixconv3d_kernel(x1_ref, x2_ref, w_ref, mask_ref, out_ref, *,
                     img_w, nb, compute_dtype):
    """Shapes (per grid step):
       x1_ref, x2_ref : (Nb, C, HW)     f32 inputs, HW = H*W on the lane axis
       w_ref          : (C, 18C + 1)    BN-folded conv weight + bias column, bf16
       mask_ref       : (9, HW)         per-tap validity masks in {0,1}
       out_ref        : (Nb, C, HW)     f32 output
    """
    _, C, HW = x1_ref.shape

    cols = []
    for i in range(nb):
        x1 = x1_ref[i].astype(compute_dtype)            # (C, HW)
        x2 = x2_ref[i].astype(compute_dtype)

        # im2col as a register value.  A spatial shift by (kh-1, kw-1) is a
        # roll by s = (kh-1)*W + (kw-1) along the flattened H*W lane axis; the
        # precomputed mask zeroes every position whose source pixel is out of
        # bounds (including the ones that wrapped across a row edge).
        tap_blocks = []
        for kh in range(3):
            for kw in range(3):
                tap = kh * 3 + kw
                s = (kh - 1) * img_w + (kw - 1)
                shift = (-s) % HW
                m = mask_ref[pl.ds(tap, 1), :]           # (1, HW)
                pair = []
                for x in (x1, x2):                       # depth 0 (x1), 1 (x2)
                    shifted = x if shift == 0 else pltpu.roll(x, shift=shift, axis=1)
                    if kh == 1 and kw == 1:              # centre tap: mask == 1
                        val = shifted
                    else:
                        val = shifted * m
                    pair.append(val)
                # (2C, HW) block: 8-sublane aligned for f32 at C=4.
                tap_blocks.append(jnp.concatenate(pair, axis=0))

        ones_row = jnp.ones((1, HW), compute_dtype)      # bias column driver
        cols.append(jnp.concatenate(tap_blocks + [ones_row], axis=0))  # (18C+1, HW)

    # Widen the RHS across the Nb images of this step: (18C+1, Nb*HW).
    col = cols[0] if nb == 1 else jnp.concatenate(cols, axis=1)

    # Single MXU contraction (bf16 operands, f32 accumulation); bias is the
    # last K column of w_ref, so only the ReLU remains.
    y = jnp.dot(w_ref[...], col.astype(jnp.bfloat16),
                preferred_element_type=jnp.float32)      # (C, Nb*HW)
    y = jnp.maximum(y, 0.0)

    for i in range(nb):
        out_ref[i] = y[:, i * HW:(i + 1) * HW].astype(out_ref.dtype)


# ----------------------------------------------------------------------------
# Wrapper (NCHW in / NCHW out — only free reshapes, no HBM transposes)
# ----------------------------------------------------------------------------
def _tap_masks(H, W, dtype):
    hh = jnp.arange(H * W, dtype=jnp.int32) // W
    ww = jnp.arange(H * W, dtype=jnp.int32) % W
    rows = []
    for kh in range(3):
        for kw in range(3):
            valid = ((hh + (kh - 1) >= 0) & (hh + (kh - 1) < H) &
                     (ww + (kw - 1) >= 0) & (ww + (kw - 1) < W))
            rows.append(valid)
    return jnp.stack(rows).astype(dtype)                 # (9, H*W)


def _choose_blocking(N):
    """Keep >= 2 parallel grid steps when possible (v7x has 2 TensorCores)
    and batch the remaining images into each step to widen the matmul RHS."""
    if N >= 2 and N % 2 == 0:
        return 2, N // 2        # (grid steps G, images per step Nb)
    return N, 1


def mixconv3d(x1_nchw, x2_nchw, wmat, compute_dtype):
    N, C, H, W = x1_nchw.shape
    HW = H * W
    G, Nb = _choose_blocking(N)

    # Contiguous, free reshapes: NCHW -> (G, Nb, C, H*W).
    x1 = x1_nchw.reshape(G, Nb, C, HW)
    x2 = x2_nchw.reshape(G, Nb, C, HW)
    masks = _tap_masks(H, W, compute_dtype)

    mask_bytes = 2 if compute_dtype == jnp.bfloat16 else 4
    cost = pl.CostEstimate(
        flops=2 * N * C * (18 * C + 1) * HW,
        transcendentals=0,
        bytes_accessed=(2 * N * C * HW * 4            # x1, x2
                        + C * (18 * C + 1) * 2        # folded weight (bf16)
                        + 9 * HW * mask_bytes         # tap masks
                        + N * C * HW * 4))            # output

    out = pl.pallas_call(
        partial(mixconv3d_kernel, img_w=W, nb=Nb, compute_dtype=compute_dtype),
        out_shape=jax.ShapeDtypeStruct((G, Nb, C, HW), jnp.float32),
        grid_spec=pltpu.PrefetchScalarGridSpec(
            num_scalar_prefetch=0,
            grid=(G,),
            in_specs=[
                pl.BlockSpec((pl.Squeezed(), Nb, C, HW), lambda g: (g, 0, 0, 0)),  # x1
                pl.BlockSpec((pl.Squeezed(), Nb, C, HW), lambda g: (g, 0, 0, 0)),  # x2
                pl.BlockSpec((C, 18 * C + 1), lambda g: (0, 0)),   # folded W|b (resident)
                pl.BlockSpec((9, HW), lambda g: (0, 0)),           # tap masks (resident)
            ],
            out_specs=pl.BlockSpec((pl.Squeezed(), Nb, C, HW), lambda g: (g, 0, 0, 0)),
        ),
        compiler_params=pltpu.CompilerParams(
            dimension_semantics=("parallel",)),
        cost_estimate=cost,
        # TODO(synk): if C/H/W ever scale, strip-tile HW (lane tiles of
        # 1024-2048 with per-strip masks) and set vmem_limit_bytes for v7x.
    )(x1, x2, wmat, masks)

    return out.reshape(N, C, H, W)


# ----------------------------------------------------------------------------
# Deterministic parameter construction (PyTorch-like init) + BN folding
# ----------------------------------------------------------------------------
def make_params(key, C):
    """Conv3d(C, C, (2,3,3)) + eval-mode BatchNorm3d(C)."""
    ks = jax.random.split(key, 6)
    fan_in = C * 2 * 3 * 3
    bound = 1.0 / math.sqrt(fan_in)
    w3 = jax.random.uniform(ks[0], (C, C, 2, 3, 3), jnp.float32, -bound, bound)
    b3 = jax.random.uniform(ks[1], (C,), jnp.float32, -bound, bound)
    gamma = 1.0 + 0.1 * jax.random.normal(ks[2], (C,), jnp.float32)
    beta = 0.1 * jax.random.normal(ks[3], (C,), jnp.float32)
    mean = 0.1 * jax.random.normal(ks[4], (C,), jnp.float32)
    var = 1.0 + 0.1 * jax.random.uniform(ks[5], (C,), jnp.float32)
    return dict(w3=w3, b3=b3, bn=(gamma, beta, mean, var))


def fold_bn(w, b, bn_params):
    gamma, beta, mean, var = bn_params
    scale = gamma / jnp.sqrt(var + EPS)
    shape = [1] * w.ndim
    shape[0] = -1
    return w * scale.reshape(shape), (b - mean) * scale + beta


def prep_kernel_params(params, C):
    """Fold BN, lay the Conv3d weight out as (C_out, 18C) to match the im2col
    row order ((kh*3 + kw)*2 + depth)*C + c_in, and append the folded bias as
    the last K column (paired with the ones row in the slab)."""
    wf, bf = fold_bn(params['w3'], params['b3'], params['bn'])
    # (O, I, D, Kh, Kw) -> (O, Kh, Kw, D, I) -> (O, 18C)
    wmat = jnp.transpose(wf, (0, 3, 4, 2, 1)).reshape(C, 18 * C)
    wmat = jnp.concatenate([wmat, bf.reshape(C, 1)], axis=1)   # (C, 18C + 1)
    return wmat.astype(jnp.bfloat16)          # bf16 MXU operands, f32 accumulate


# ----------------------------------------------------------------------------
# Independent pure-JAX reference (explicit Conv3d + BatchNorm3d + ReLU)
# ----------------------------------------------------------------------------
def ref_forward(x1, x2, p):
    x = jnp.stack([x1, x2], axis=2)                     # (N, C, 2, H, W)
    y = jax.lax.conv_general_dilated(
        x, p['w3'], window_strides=(2, 1, 1),
        padding=[(0, 0), (1, 1), (1, 1)],
        dimension_numbers=('NCDHW', 'OIDHW', 'NCDHW'))
    y = y + p['b3'][None, :, None, None, None]
    gamma, beta, mean, var = p['bn']
    bcast = lambda v: v[None, :, None, None, None]
    y = bcast(gamma) * (y - bcast(mean)) / jnp.sqrt(bcast(var) + EPS) + bcast(beta)
    y = jnp.maximum(y, 0.0)
    return y[:, :, 0]                                   # squeeze depth


if __name__ == "__main__":
    key = jax.random.PRNGKey(0)
    k1, k2, kp = jax.random.split(key, 3)

    N, C, H, W = 2, 4, 16, 16
    x1 = jax.random.normal(k1, (N, C, H, W), jnp.float32)
    x2 = jax.random.normal(k2, (N, C, H, W), jnp.float32)

    params = make_params(kp, C)
    wmat = prep_kernel_params(params, C)
    compute_dtype = _elementwise_dtype()

    out = mixconv3d(x1, x2, wmat, compute_dtype)
    out = jax.block_until_ready(out)

    ref = ref_forward(x1, x2, params)
    assert out.shape == ref.shape == (N, C, H, W)
    max_err = float(jnp.max(jnp.abs(out - ref)))
    # bf16 matmul operands (weights + bias column + im2col slab) with f32
    # accumulation -> tolerance loosened vs a pure-f32 pipeline.
    assert max_err < 3e-2, f"mismatch vs reference: max abs err = {max_err}"

    print("KERNEL_OK")
</pallas_src>

<mosaic_0001>
module attributes {stable_mosaic.version = 11 : i64} {
  func.func @mixconv3d_kernel(%arg0: i32, %arg1: memref<1x1x4x256xf32, #tpu.memory_space<vmem>>, %arg2: memref<1x1x4x256xf32, #tpu.memory_space<vmem>>, %arg3: memref<4x73xbf16, #tpu.memory_space<vmem>>, %arg4: memref<9x256xf32, #tpu.memory_space<vmem>>, %arg5: memref<1x1x4x256xf32, #tpu.memory_space<vmem>>) attributes {dimension_semantics = [#tpu.dimension_semantics<parallel>], iteration_bounds = array<i64: 2>, scalar_prefetch = 0 : i64, scratch_operands = 0 : i64, tpu.core_type = #tpu.core_type<tc>, window_params = [{transform_indices = @transform_0, window_bounds = array<i64: 1, 1, 4, 256>}, {transform_indices = @transform_1, window_bounds = array<i64: 1, 1, 4, 256>}, {pipeline_mode = #tpu.pipeline_mode<synchronous>, transform_indices = @transform_2, window_bounds = array<i64: 4, 73>}, {pipeline_mode = #tpu.pipeline_mode<synchronous>, transform_indices = @transform_3, window_bounds = array<i64: 9, 256>}, {transform_indices = @transform_4, window_bounds = array<i64: 1, 1, 4, 256>}]} {
    %c0 = arith.constant 0 : index
    %c0_0 = arith.constant 0 : index
    %c0_1 = arith.constant 0 : index
    %c0_2 = arith.constant 0 : index
    %0 = vector.load %arg1[%c0, %c0_0, %c0_1, %c0_2] : memref<1x1x4x256xf32, #tpu.memory_space<vmem>>, vector<1x1x4x256xf32>
    %1 = vector.shape_cast %0 : vector<1x1x4x256xf32> to vector<4x256xf32>
    %c0_3 = arith.constant 0 : index
    %c0_4 = arith.constant 0 : index
    %c0_5 = arith.constant 0 : index
    %c0_6 = arith.constant 0 : index
    %2 = vector.load %arg2[%c0_3, %c0_4, %c0_5, %c0_6] : memref<1x1x4x256xf32, #tpu.memory_space<vmem>>, vector<1x1x4x256xf32>
    %3 = vector.shape_cast %2 : vector<1x1x4x256xf32> to vector<4x256xf32>
    %c0_7 = arith.constant 0 : index
    %c0_8 = arith.constant 0 : index
    %4 = vector.load %arg4[%c0_7, %c0_8] : memref<9x256xf32, #tpu.memory_space<vmem>>, vector<1x256xf32>
    %c17_i32 = arith.constant 17 : i32
    %5 = tpu.dynamic_rotate %1 by %c17_i32 dim 1 : vector<4x256xf32>, i32 -> vector<4x256xf32>
    %6 = vector.broadcast %4 : vector<1x256xf32> to vector<4x256xf32>
    %7 = arith.mulf %5, %6 : vector<4x256xf32>
    %c17_i32_9 = arith.constant 17 : i32
    %8 = tpu.dynamic_rotate %3 by %c17_i32_9 dim 1 : vector<4x256xf32>, i32 -> vector<4x256xf32>
    %9 = vector.broadcast %4 : vector<1x256xf32> to vector<4x256xf32>
    %10 = arith.mulf %8, %9 : vector<4x256xf32>
    %11 = tpu.concatenate %7, %10 in 0 : vector<4x256xf32>, vector<4x256xf32> -> vector<8x256xf32>
    %c1 = arith.constant 1 : index
    %c0_10 = arith.constant 0 : index
    %12 = vector.load %arg4[%c1, %c0_10] : memref<9x256xf32, #tpu.memory_space<vmem>>, vector<1x256xf32>
    %c16_i32 = arith.constant 16 : i32
    %13 = tpu.dynamic_rotate %1 by %c16_i32 dim 1 : vector<4x256xf32>, i32 -> vector<4x256xf32>
    %14 = vector.broadcast %12 : vector<1x256xf32> to vector<4x256xf32>
    %15 = arith.mulf %13, %14 : vector<4x256xf32>
    %c16_i32_11 = arith.constant 16 : i32
    %16 = tpu.dynamic_rotate %3 by %c16_i32_11 dim 1 : vector<4x256xf32>, i32 -> vector<4x256xf32>
    %17 = vector.broadcast %12 : vector<1x256xf32> to vector<4x256xf32>
    %18 = arith.mulf %16, %17 : vector<4x256xf32>
    %19 = tpu.concatenate %15, %18 in 0 : vector<4x256xf32>, vector<4x256xf32> -> vector<8x256xf32>
    %c2 = arith.constant 2 : index
    %c0_12 = arith.constant 0 : index
    %20 = vector.load %arg4[%c2, %c0_12] : memref<9x256xf32, #tpu.memory_space<vmem>>, vector<1x256xf32>
    %c15_i32 = arith.constant 15 : i32
    %21 = tpu.dynamic_rotate %1 by %c15_i32 dim 1 : vector<4x256xf32>, i32 -> vector<4x256xf32>
    %22 = vector.broadcast %20 : vector<1x256xf32> to vector<4x256xf32>
    %23 = arith.mulf %21, %22 : vector<4x256xf32>
    %c15_i32_13 = arith.constant 15 : i32
    %24 = tpu.dynamic_rotate %3 by %c15_i32_13 dim 1 : vector<4x256xf32>, i32 -> vector<4x256xf32>
    %25 = vector.broadcast %20 : vector<1x256xf32> to vector<4x256xf32>
    %26 = arith.mulf %24, %25 : vector<4x256xf32>
    %27 = tpu.concatenate %23, %26 in 0 : vector<4x256xf32>, vector<4x256xf32> -> vector<8x256xf32>
    %c3 = arith.constant 3 : index
    %c0_14 = arith.constant 0 : index
    %28 = vector.load %arg4[%c3, %c0_14] : memref<9x256xf32, #tpu.memory_space<vmem>>, vector<1x256xf32>
    %c1_i32 = arith.constant 1 : i32
    %29 = tpu.dynamic_rotate %1 by %c1_i32 dim 1 : vector<4x256xf32>, i32 -> vector<4x256xf32>
    %30 = vector.broadcast %28 : vector<1x256xf32> to vector<4x256xf32>
    %31 = arith.mulf %29, %30 : vector<4x256xf32>
    %c1_i32_15 = arith.constant 1 : i32
    %32 = tpu.dynamic_rotate %3 by %c1_i32_15 dim 1 : vector<4x256xf32>, i32 -> vector<4x256xf32>
    %33 = vector.broadcast %28 : vector<1x256xf32> to vector<4x256xf32>
    %34 = arith.mulf %32, %33 : vector<4x256xf32>
    %35 = tpu.concatenate %31, %34 in 0 : vector<4x256xf32>, vector<4x256xf32> -> vector<8x256xf32>
    %36 = tpu.concatenate %1, %3 in 0 : vector<4x256xf32>, vector<4x256xf32> -> vector<8x256xf32>
    %c5 = arith.constant 5 : index
    %c0_16 = arith.constant 0 : index
    %37 = vector.load %arg4[%c5, %c0_16] : memref<9x256xf32, #tpu.memory_space<vmem>>, vector<1x256xf32>
    %c255_i32 = arith.constant 255 : i32
    %38 = tpu.dynamic_rotate %1 by %c255_i32 dim 1 : vector<4x256xf32>, i32 -> vector<4x256xf32>
    %39 = vector.broadcast %37 : vector<1x256xf32> to vector<4x256xf32>
    %40 = arith.mulf %38, %39 : vector<4x256xf32>
    %c255_i32_17 = arith.constant 255 : i32
    %41 = tpu.dynamic_rotate %3 by %c255_i32_17 dim 1 : vector<4x256xf32>, i32 -> vector<4x256xf32>
    %42 = vector.broadcast %37 : vector<1x256xf32> to vector<4x256xf32>
    %43 = arith.mulf %41, %42 : vector<4x256xf32>
    %44 = tpu.concatenate %40, %43 in 0 : vector<4x256xf32>, vector<4x256xf32> -> vector<8x256xf32>
    %c6 = arith.constant 6 : index
    %c0_18 = arith.constant 0 : index
    %45 = vector.load %arg4[%c6, %c0_18] : memref<9x256xf32, #tpu.memory_space<vmem>>, vector<1x256xf32>
    %c241_i32 = arith.constant 241 : i32
    %46 = tpu.dynamic_rotate %1 by %c241_i32 dim 1 : vector<4x256xf32>, i32 -> vector<4x256xf32>
    %47 = vector.broadcast %45 : vector<1x256xf32> to vector<4x256xf32>
    %48 = arith.mulf %46, %47 : vector<4x256xf32>
    %c241_i32_19 = arith.constant 241 : i32
    %49 = tpu.dynamic_rotate %3 by %c241_i32_19 dim 1 : vector<4x256xf32>, i32 -> vector<4x256xf32>
    %50 = vector.broadcast %45 : vector<1x256xf32> to vector<4x256xf32>
    %51 = arith.mulf %49, %50 : vector<4x256xf32>
    %52 = tpu.concatenate %48, %51 in 0 : vector<4x256xf32>, vector<4x256xf32> -> vector<8x256xf32>
    %c7 = arith.constant 7 : index
    %c0_20 = arith.constant 0 : index
    %53 = vector.load %arg4[%c7, %c0_20] : memref<9x256xf32, #tpu.memory_space<vmem>>, vector<1x256xf32>
    %c240_i32 = arith.constant 240 : i32
    %54 = tpu.dynamic_rotate %1 by %c240_i32 dim 1 : vector<4x256xf32>, i32 -> vector<4x256xf32>
    %55 = vector.broadcast %53 : vector<1x256xf32> to vector<4x256xf32>
    %56 = arith.mulf %54, %55 : vector<4x256xf32>
    %c240_i32_21 = arith.constant 240 : i32
    %57 = tpu.dynamic_rotate %3 by %c240_i32_21 dim 1 : vector<4x256xf32>, i32 -> vector<4x256xf32>
    %58 = vector.broadcast %53 : vector<1x256xf32> to vector<4x256xf32>
    %59 = arith.mulf %57, %58 : vector<4x256xf32>
    %60 = tpu.concatenate %56, %59 in 0 : vector<4x256xf32>, vector<4x256xf32> -> vector<8x256xf32>
    %c8 = arith.constant 8 : index
    %c0_22 = arith.constant 0 : index
    %61 = vector.load %arg4[%c8, %c0_22] : memref<9x256xf32, #tpu.memory_space<vmem>>, vector<1x256xf32>
    %c239_i32 = arith.constant 239 : i32
    %62 = tpu.dynamic_rotate %1 by %c239_i32 dim 1 : vector<4x256xf32>, i32 -> vector<4x256xf32>
    %63 = vector.broadcast %61 : vector<1x256xf32> to vector<4x256xf32>
    %64 = arith.mulf %62, %63 : vector<4x256xf32>
    %c239_i32_23 = arith.constant 239 : i32
    %65 = tpu.dynamic_rotate %3 by %c239_i32_23 dim 1 : vector<4x256xf32>, i32 -> vector<4x256xf32>
    %66 = vector.broadcast %61 : vector<1x256xf32> to vector<4x256xf32>
    %67 = arith.mulf %65, %66 : vector<4x256xf32>
    %68 = tpu.concatenate %64, %67 in 0 : vector<4x256xf32>, vector<4x256xf32> -> vector<8x256xf32>
    %cst = arith.constant 1.000000e+00 : f32
    %69 = vector.broadcast %cst : f32 to vector<1x256xf32>
    %70 = tpu.concatenate %11, %19, %27, %35, %36, %44, %52, %60, %68, %69 in 0 : vector<8x256xf32>, vector<8x256xf32>, vector<8x256xf32>, vector<8x256xf32>, vector<8x256xf32>, vector<8x256xf32>, vector<8x256xf32>, vector<8x256xf32>, vector<8x256xf32>, vector<1x256xf32> -> vector<73x256xf32>
    %c0_24 = arith.constant 0 : index
    %c0_25 = arith.constant 0 : index
    %71 = vector.load %arg3[%c0_24, %c0_25] : memref<4x73xbf16, #tpu.memory_space<vmem>>, vector<4x73xbf16>
    %72 = arith.truncf %70 : vector<73x256xf32> to vector<73x256xbf16>
    %cst_26 = arith.constant dense<0.000000e+00> : vector<4x256xf32>
    %73 = tpu.matmul %71, %72, %cst_26 {dimension_numbers = #tpu.dot_dimension_numbers<[1], [0], [0], [1], [0, 0, 1, 1], [], []>} : vector<4x73xbf16>, vector<73x256xbf16>, vector<4x256xf32> -> vector<4x256xf32>
    %cst_27 = arith.constant 0.000000e+00 : f32
    %74 = vector.broadcast %cst_27 : f32 to vector<4x256xf32>
    %75 = arith.maximumf %73, %74 : vector<4x256xf32>
    %c0_28 = arith.constant 0 : index
    %c0_29 = arith.constant 0 : index
    %c0_30 = arith.constant 0 : index
    %c0_31 = arith.constant 0 : index
    %76 = vector.load %arg5[%c0_28, %c0_29, %c0_30, %c0_31] : memref<1x1x4x256xf32, #tpu.memory_space<vmem>>, vector<1x1x4x256xf32>
    %77 = vector.shape_cast %76 : vector<1x1x4x256xf32> to vector<4x256xf32>
    %78 = vector.shape_cast %75 : vector<4x256xf32> to vector<1x1x4x256xf32>
    tpu.vector_store %arg5[%c0_28, %c0_29, %c0_30, %c0_31], %78 {strides = array<i32>} : memref<1x1x4x256xf32, #tpu.memory_space<vmem>>, vector<1x1x4x256xf32>,
    return
  }
  func.func @transform_0(%arg0: i32) -> (i32, i32, i32, i32) {
    %c0_i32 = arith.constant 0 : i32
    %c0_i32_0 = arith.constant 0 : i32
    %c0_i32_1 = arith.constant 0 : i32
    %c0_i32_2 = arith.constant 0 : i32
    return %arg0, %c0_i32, %c0_i32_0, %c0_i32_1 : i32, i32, i32, i32
  }
  func.func @transform_1(%arg0: i32) -> (i32, i32, i32, i32) {
    %c0_i32 = arith.constant 0 : i32
    %c0_i32_0 = arith.constant 0 : i32
    %c0_i32_1 = arith.constant 0 : i32
    %c0_i32_2 = arith.constant 0 : i32
    return %arg0, %c0_i32, %c0_i32_0, %c0_i32_1 : i32, i32, i32, i32
  }
  func.func @transform_2(%arg0: i32) -> (i32, i32) {
    %c0_i32 = arith.constant 0 : i32
    %c0_i32_0 = arith.constant 0 : i32
    %c0_i32_1 = arith.constant 0 : i32
    return %c0_i32, %c0_i32_0 : i32, i32
  }
  func.func @transform_3(%arg0: i32) -> (i32, i32) {
    %c0_i32 = arith.constant 0 : i32
    %c0_i32_0 = arith.constant 0 : i32
    %c0_i32_1 = arith.constant 0 : i32
    return %c0_i32, %c0_i32_0 : i32, i32
  }
  func.func @transform_4(%arg0: i32) -> (i32, i32, i32, i32) {
    %c0_i32 = arith.constant 0 : i32
    %c0_i32_0 = arith.constant 0 : i32
    %c0_i32_1 = arith.constant 0 : i32
    %c0_i32_2 = arith.constant 0 : i32
    return %arg0, %c0_i32, %c0_i32_0, %c0_i32_1 : i32, i32, i32, i32
  }
}

</mosaic_0001>

<llo_original>
// kernel: tpu_custom_call.1
$region0: #{tpu_custom_call.1}
  #allocation0 [shape = 'u32[]', space=smem, size = 0x4, offset = 0x4, fixed_abs, tag = 'smem constant byte address 0x4 - core index']
  #allocation1 [shape = 'u32[144,128]{1,0:T(1,128)}', space=vmem, size = 0x12000, scoped, tag = 'internal scratch']
  %s0 = inlined_call_operand.hbm [shape: f32[2,1,4,256], index: 0, kind: input, shape index: {}]
  %s1 = inlined_call_operand.hbm [shape: f32[2,1,4,256], index: 1, kind: input, shape index: {}]
  %s2 = inlined_call_operand.vmem [shape: bf16[4,73], index: 2, kind: input, shape index: {}]
  %s3 = inlined_call_operand.hbm [shape: f32[9,256], index: 3, kind: input, shape index: {}]
  %s4 = inlined_call_operand.hbm [shape: f32[2,1,4,256], index: 4, kind: output, shape index: {}]
  %s5 = sld [smem:[#allocation0]]
  $region61: #{tpu_custom_call.1} parent=0
    _
  %s7 = ssub.s32 1, %s5
  %s8 = scalar_select 0, %s7, %s5
  $region1: #{tpu_custom_call.1} parent=0
    #allocation2 [shape = 'u8[8192]{0}', space=vmem, size = 0x2000, scoped, tag = 'input window, operand 0']
    #allocation3 [shape = 's32[2]{0}', space=sflag, size = 0x8, scoped, tag = 'scoped memory for tpu_custom_call.1']
    #allocation4 [shape = 's32[2]{0}', space=sflag, size = 0x8, scoped, tag = 'scoped memory for tpu_custom_call.1']
    #allocation5 [shape = 'u8[8192]{0}', space=vmem, size = 0x2000, scoped, tag = 'input window, operand 1']
    #allocation6 [shape = 's32[2]{0}', space=sflag, size = 0x8, scoped, tag = 'scoped memory for tpu_custom_call.1']
    #allocation7 [shape = 'u8[16384]{0}', space=vmem, size = 0x4000, scoped, tag = 'input window, operand 3, single buffered']
    #allocation8 [shape = 'u8[8192]{0}', space=vmem, size = 0x2000, scoped, tag = 'output window, operand 0']
    %9 = vsyncpa [#allocation3], 0
    %s10 = scalar_lea.sflag [#allocation3], 1
    %11 = vsyncpa %s10, 0
    %12 = vsyncpa [#allocation6], 0
    %s13 = scalar_lea.sflag [#allocation6], 1
    %14 = vsyncpa %s13, 0
    %15 = vsyncpa [#allocation4], 0
    %s16 = scalar_lea.sflag [#allocation4], 1
    %17 = vsyncpa %s16, 0
    loop: start=0, step=1, limit=4
    $region2: #{tpu_custom_call.1} parent=1 // loop_pre_header
      _
    $region3: #{tpu_custom_call.1} parent=1 // loop_header
      %s19 = sphi 0, %s23
      %p20 = scmp.ge.s32.totalorder %s19, 4
      %s29 = sphi 0, %s31
      %s32 = sphi 0, %s29
      %s33 = sphi 0, %s32
      %s49 = sphi 0, %s33
      %s55 = sphi 0, %s57
      %s58 = sphi 0, %s55
      %s59 = sphi 0, %s58
      %s75 = sphi 0, %s59
      %s79 = sphi 0, %s79
      %s81 = sphi 0, %s79
      %s82 = sphi 0, %s81
      %s96 = sphi 0, %s82
      %s100 = sphi 0, %s100
      %s102 = sphi 0, %s100
      %s103 = sphi 0, %s102
      %s117 = sphi 0, %s103
      %s123 = sphi 0, %s125
      %s126 = sphi 0, %s123
      %s127 = sphi 0, %s126
      %s143 = sphi 0, %s127
    $region4: #{tpu_custom_call.1} parent=1 // loop_header_branch
      %22 = sbr.rel (%p20) target = $region8
    $region5: #{tpu_custom_call.1} parent=1 // loop_body
      %s24 = ssub.s32 %s19, 1
      %s25 = ssub.s32 %s19, 2
      %s26 = sadd.s32 %s19, 1
      %s27 = ssub.s32 %s19, %s26
      %p28 = scmp.eq.s32.totalorder %s27, 0
      %s30 = sadd.s32 %s29, 1
      %s31 = scalar_select %p28, %s29, %s30
      %p34 = pneg %p28
      %p35 = scmp.eq.s32.totalorder %s19, 1
      %p36 = por %p34, %p35
      %p37 = scmp.ne.s32.totalorder %s29, %s32
      %p38 = scmp.eq.s32.totalorder %s19, 0
      %p39 = por %p37, %p38
      %p40 = scmp.ne.s32.totalorder %s29, %s32
      %p41 = scmp.eq.s32.totalorder %s24, 1
      %p42 = por %p40, %p41
      %p43 = scmp.ne.s32.totalorder %s32, %s33
      %p44 = scmp.eq.s32.totalorder %s24, 0
      %p45 = por %p43, %p44
      %p46 = scmp.ne.s32.totalorder %s32, %s33
      %p47 = scmp.eq.s32.totalorder %s25, 1
      %p48 = por %p46, %p47
      %p50 = scmp.ne.s32.totalorder %s33, %s49
      %p51 = scmp.eq.s32.totalorder %s25, 0
      %p52 = por %p50, %p51
      %s53 = ssub.s32 %s19, %s26
      %p54 = scmp.eq.s32.totalorder %s53, 0
      %s56 = sadd.s32 %s55, 1
      %s57 = scalar_select %p54, %s55, %s56
      %p60 = pneg %p54
      %p61 = scmp.eq.s32.totalorder %s19, 1
      %p62 = por %p60, %p61
      %p63 = scmp.ne.s32.totalorder %s55, %s58
      %p64 = scmp.eq.s32.totalorder %s19, 0
      %p65 = por %p63, %p64
      %p66 = scmp.ne.s32.totalorder %s55, %s58
      %p67 = scmp.eq.s32.totalorder %s24, 1
      %p68 = por %p66, %p67
      %p69 = scmp.ne.s32.totalorder %s58, %s59
      %p70 = scmp.eq.s32.totalorder %s24, 0
      %p71 = por %p69, %p70
      %p72 = scmp.ne.s32.totalorder %s58, %s59
      %p73 = scmp.eq.s32.totalorder %s25, 1
      %p74 = por %p72, %p73
      %p76 = scmp.ne.s32.totalorder %s59, %s75
      %p77 = scmp.eq.s32.totalorder %s25, 0
      %p78 = por %p76, %p77
      %s80 = sadd.s32 %s79, 1
      %p83 = scmp.eq.s32.totalorder %s19, 1
      %p84 = scmp.ne.s32.totalorder %s79, %s81
      %p85 = scmp.eq.s32.totalorder %s19, 0
      %p86 = por %p84, %p85
      %p87 = scmp.ne.s32.totalorder %s79, %s81
      %p88 = scmp.eq.s32.totalorder %s24, 1
      %p89 = por %p87, %p88
      %p90 = scmp.ne.s32.totalorder %s81, %s82
      %p91 = scmp.eq.s32.totalorder %s24, 0
      %p92 = por %p90, %p91
      %p93 = scmp.ne.s32.totalorder %s81, %s82
      %p94 = scmp.eq.s32.totalorder %s25, 1
      %p95 = por %p93, %p94
      %p97 = scmp.ne.s32.totalorder %s82, %s96
      %p98 = scmp.eq.s32.totalorder %s25, 0
      %p99 = por %p97, %p98
      %s101 = sadd.s32 %s100, 1
      %p104 = scmp.eq.s32.totalorder %s19, 1
      %p105 = scmp.ne.s32.totalorder %s100, %s102
      %p106 = scmp.eq.s32.totalorder %s19, 0
      %p107 = por %p105, %p106
      %p108 = scmp.ne.s32.totalorder %s100, %s102
      %p109 = scmp.eq.s32.totalorder %s24, 1
      %p110 = por %p108, %p109
      %p111 = scmp.ne.s32.totalorder %s102, %s103
      %p112 = scmp.eq.s32.totalorder %s24, 0
      %p113 = por %p111, %p112
      %p114 = scmp.ne.s32.totalorder %s102, %s103
      %p115 = scmp.eq.s32.totalorder %s25, 1
      %p116 = por %p114, %p115
      %p118 = scmp.ne.s32.totalorder %s103, %s117
      %p119 = scmp.eq.s32.totalorder %s25, 0
      %p120 = por %p118, %p119
      %s121 = ssub.s32 %s19, %s26
      %p122 = scmp.eq.s32.totalorder %s121, 0
      %s124 = sadd.s32 %s123, 1
      %s125 = scalar_select %p122, %s123, %s124
      %p128 = pneg %p122
      %p129 = scmp.eq.s32.totalorder %s19, 1
      %p130 = por %p128, %p129
      %p131 = scmp.ne.s32.totalorder %s123, %s126
      %p132 = scmp.eq.s32.totalorder %s19, 0
      %p133 = por %p131, %p132
      %p134 = scmp.ne.s32.totalorder %s123, %s126
      %p135 = scmp.eq.s32.totalorder %s24, 1
      %p136 = por %p134, %p135
      %p137 = scmp.ne.s32.totalorder %s126, %s127
      %p138 = scmp.eq.s32.totalorder %s24, 0
      %p139 = por %p137, %p138
      %p140 = scmp.ne.s32.totalorder %s126, %s127
      %p141 = scmp.eq.s32.totalorder %s25, 1
      %p142 = por %p140, %p141
      %p144 = scmp.ne.s32.totalorder %s127, %s143
      %p145 = scmp.eq.s32.totalorder %s25, 0
      %p146 = por %p144, %p145
      %p147 = scmp.le.s32.totalorder 1, %s19
      %p148 = scmp.lt.s32.totalorder %s19, 3
      %p149 = pnand %p147, %p148
      %p150 = pneg %p149
      // Predicated region
      $region9: #{tpu_custom_call.1} parent=5 // pred_check
        _
      $region10: #{tpu_custom_call.1} parent=5 // pred_check_branch
        %152 = sbr.rel (%p149) target = $region12
      $region11: #{tpu_custom_call.1} parent=5 // pred_region
        %s153 = ssub.s32 %s19, 1
        // Predicated region
        $region13: #{tpu_custom_call.1} parent=11 // pred_check
          %p154 = pneg %p92
        $region14: #{tpu_custom_call.1} parent=11 // pred_check_branch
          %156 = sbr.rel (%p154) target = $region16
        $region15: #{tpu_custom_call.1} parent=11 // pred_region
          _
        $region16: #{tpu_custom_call.1} parent=11 // pred_fallthru
          _
        // Predicated region
        $region17: #{tpu_custom_call.1} parent=11 // pred_check
          %p157 = pneg %p113
        $region18: #{tpu_custom_call.1} parent=11 // pred_check_branch
          %159 = sbr.rel (%p157) target = $region20
        $region19: #{tpu_custom_call.1} parent=11 // pred_region
          %s161 = ssub.s32 512, 512
          %162 = vsyncadd [#allocation6], %s161
          %s163 = sshll.u32 [#allocation7], 4
          %s164 = int_to_ptr.vmem [resolvable:$true] %s163
          %169 = dma.hbm_to_vmem [thread:$0]  %s3, 512, %s164, [#allocation6], 256, 256, 16
        $region20: #{tpu_custom_call.1} parent=11 // pred_fallthru
          _
      $region12: #{tpu_custom_call.1} parent=5 // pred_fallthru
        _
      %p170 = scmp.lt.s32.totalorder %s19, 2
      // Predicated region
      $region21: #{tpu_custom_call.1} parent=5 // pred_check
        %p171 = pneg %p170
      $region22: #{tpu_custom_call.1} parent=5 // pred_check_branch
        %173 = sbr.rel (%p171) target = $region24
      $region23: #{tpu_custom_call.1} parent=5 // pred_region
        // Predicated region
        $region25: #{tpu_custom_call.1} parent=23 // pred_check
          %p174 = pneg %p39
        $region26: #{tpu_custom_call.1} parent=23 // pred_check_branch
          %176 = sbr.rel (%p174) target = $region28
        $region27: #{tpu_custom_call.1} parent=23 // pred_region
          %s177 = sand.u32 %s29, 1
          %s178 = scalar_lea.sflag [#allocation3], %s177
          %s179 = sand.u32 %s29, 1
          %s180 = smul.addr %s179, 8
          %s181 = scalar_lea.vmem [#allocation2], %s180
          %s183 = ssub.s32 128, 128
          %184 = vsyncadd %s178, %s183
          %s185 = smul.addr %s19, 2
          %s186 = smul.addr %s185, 64
          %s187 = scalar_lea.hbm %s0, %s186
          %s189 = sshll.u32 %s181, 4
          %s190 = int_to_ptr.vmem [resolvable:$true] %s189
          %192 = dma.hbm_to_vmem [thread:$0]  %s187, 128, %s190, %s178
        $region28: #{tpu_custom_call.1} parent=23 // pred_fallthru
          _
        // Predicated region
        $region29: #{tpu_custom_call.1} parent=23 // pred_check
          %p193 = pneg %p65
        $region30: #{tpu_custom_call.1} parent=23 // pred_check_branch
          %195 = sbr.rel (%p193) target = $region32
        $region31: #{tpu_custom_call.1} parent=23 // pred_region
          %s196 = sand.u32 %s19, 1
          %s197 = scalar_lea.sflag [#allocation6], %s196
          %s198 = sand.u32 %s55, 1
          %s199 = smul.addr %s198, 8
          %s200 = scalar_lea.vmem [#allocation5], %s199
          %s202 = ssub.s32 128, 128
          %203 = vsyncadd %s197, %s202
          %s204 = smul.addr %s19, 2
          %s205 = smul.addr %s204, 64
          %s206 = scalar_lea.hbm %s1, %s205
          %s208 = sshll.u32 %s200, 4
          %s209 = int_to_ptr.vmem [resolvable:$true] %s208
          %211 = dma.hbm_to_vmem [thread:$0]  %s206, 128, %s209, %s197
        $region32: #{tpu_custom_call.1} parent=23 // pred_fallthru
          _
      $region24: #{tpu_custom_call.1} parent=5 // pred_fallthru
        _
      %p212 = scmp.le.s32.totalorder 1, %s19
      %p213 = scmp.lt.s32.totalorder %s19, 3
      %p214 = pnand %p212, %p213
      %p215 = pneg %p214
      // Predicated region
      $region33: #{tpu_custom_call.1} parent=5 // pred_check
        _
      $region34: #{tpu_custom_call.1} parent=5 // pred_check_branch
        %217 = sbr.rel (%p214) target = $region36
      $region35: #{tpu_custom_call.1} parent=5 // pred_region
        %s218 = ssub.s32 %s19, 1
        %s219 = sand.u32 %s32, 1
        %s220 = scalar_lea.sflag [#allocation3], %s219
        %s221 = sand.u32 %s32, 1
        %s222 = smul.addr %s221, 8
        %s223 = scalar_lea.vmem [#allocation2], %s222
        // Predicated region
        $region37: #{tpu_custom_call.1} parent=35 // pred_check
          %p224 = pneg %p45
        $region38: #{tpu_custom_call.1} parent=35 // pred_check_branch
          %226 = sbr.rel (%p224) target = $region40
        $region39: #{tpu_custom_call.1} parent=35 // pred_region
          %227 = dma.done %s220, 128
        $region40: #{tpu_custom_call.1} parent=35 // pred_fallthru
          _
        %s228 = sand.u32 %s24, 1
        %s229 = scalar_lea.sflag [#allocation6], %s228
        %s230 = sand.u32 %s58, 1
        %s231 = smul.addr %s230, 8
        %s232 = scalar_lea.vmem [#allocation5], %s231
        // Predicated region
        $region41: #{tpu_custom_call.1} parent=35 // pred_check
          %p233 = pneg %p71
        $region42: #{tpu_custom_call.1} parent=35 // pred_check_branch
          %235 = sbr.rel (%p233) target = $region44
        $region43: #{tpu_custom_call.1} parent=35 // pred_region
          %236 = dma.done %s229, 128
        $region44: #{tpu_custom_call.1} parent=35 // pred_fallthru
          _
        // Predicated region
        $region45: #{tpu_custom_call.1} parent=35 // pred_check
          %p237 = pneg %p113
        $region46: #{tpu_custom_call.1} parent=35 // pred_check_branch
          %239 = sbr.rel (%p237) target = $region48
        $region47: #{tpu_custom_call.1} parent=35 // pred_region
          %240 = dma.done [#allocation6], 512
        $region48: #{tpu_custom_call.1} parent=35 // pred_fallthru
          _
        %s241 = sand.u32 %s32, 1
        %s242 = scalar_lea.sflag [#allocation3], %s241
        %s243 = sand.u32 %s32, 1
        %s244 = smul.addr %s243, 8
        %s245 = scalar_lea.vmem [#allocation2], %s244
        %p246 = pneg %p45
        %p247 = pneg %p42
        %s248 = sand.u32 %s24, 1
        %s249 = scalar_lea.sflag [#allocation6], %s248
        %s250 = sand.u32 %s58, 1
        %s251 = smul.addr %s250, 8
        %s252 = scalar_lea.vmem [#allocation5], %s251
        %p253 = pneg %p71
        %p254 = pneg %p68
        %p255 = pneg %p92
        %p256 = pneg %p89
        %p257 = pneg %p113
        %p258 = pneg %p110
        %p259 = pneg %p139
        %p260 = pneg %p136
        %s261 = sand.u32 %s126, 1
        %s262 = scalar_lea.sflag [#allocation4], %s261
        %s263 = sand.u32 %s126, 1
        %s264 = smul.addr %s263, 8
        %s265 = scalar_lea.vmem [#allocation8], %s264
        %v267 = vld [vmem:[%s223] sm:$0xff]
        %v268 = vld [vmem:[%s232] sm:$0xff]
        %v269 = vld [vmem:[#allocation7] ss:$8 sm:$0x3]
        %v271 = vcombine.high %v267, %v267
        %273 = vrot.lane.b32.xlu0 %v267, 17
        %v274 = vpop.permute.xlu0 %273
        %275 = vrot.lane.b32.xlu0 %v271, 17
        %v276 = vpop.permute.xlu0 %275
        %v277 = vlaneseq
        %v278 = vand.u32 %v277, 127
        %vm279 = vcmp.lt.s32.totalorder %v278, 17
        %v280 = vsel %vm279, %v274, %v276
        %v281 = vsel %vm279, %v276, %v274
        %v283 = vlaneseq
        %v284 = vshrl.u32 %v283, 7
        %v285 = vsub.s32 0, %v284
        %v286 = vrot.slane %v269, %v285
        %v287 = vlaneseq
        %v288 = vshrl.u32 %v287, 7
        %v289 = vsub.s32 1, %v288
        %v290 = vrot.slane %v269, %v289
        %v293 = vmul.f32 %v281, %v286
        %v294 = vmul.f32 %v280, %v290
        %v296 = vcombine.high %v268, %v268
        %298 = vrot.lane.b32.xlu0 %v268, 17
        %v299 = vpop.permute.xlu0 %298
        %300 = vrot.lane.b32.xlu0 %v296, 17
        %v301 = vpop.permute.xlu0 %300
        %v302 = vsel %vm279, %v299, %v301
        %v303 = vsel %vm279, %v301, %v299
        %v304 = vmul.f32 %v303, %v286
        %v305 = vmul.f32 %v302, %v290
        %v308 = vrot.slane %v304, 4
        %v309 = vrot.slane %v305, 4
        %vm312 = vcmask 1043456
        %v313 = vsel %vm312, %v293, %v308
        %v314 = vsel %vm312, %v294, %v309
        %s315 = scalar_lea.vmem [#allocation7], 1
        %v316 = vld [vmem:[%s315] ss:$8 sm:$0x3]
        %317 = vrot.lane.b32.xlu0 %v267, 16
        %v318 = vpop.permute.xlu0 %317
        %319 = vrot.lane.b32.xlu0 %v271, 16
        %v320 = vpop.permute.xlu0 %319
        %vm321 = vcmp.lt.s32.totalorder %v278, 16
        %v322 = vsel %vm321, %v318, %v320
        %v323 = vsel %vm321, %v320, %v318
        %v325 = vlaneseq
        %v326 = vshrl.u32 %v325, 7
        %v327 = vsub.s32 0, %v326
        %v328 = vrot.slane %v316, %v327
        %v329 = vlaneseq
        %v330 = vshrl.u32 %v329, 7
        %v331 = vsub.s32 1, %v330
        %v332 = vrot.slane %v316, %v331
        %v335 = vmul.f32 %v323, %v328
        %v336 = vmul.f32 %v322, %v332
        %337 = vrot.lane.b32.xlu0 %v268, 16
        %v338 = vpop.permute.xlu0 %337
        %339 = vrot.lane.b32.xlu0 %v296, 16
        %v340 = vpop.permute.xlu0 %339
        %v341 = vsel %vm321, %v338, %v340
        %v342 = vsel %vm321, %v340, %v338
        %v343 = vmul.f32 %v342, %v328
        %v344 = vmul.f32 %v341, %v332
        %v347 = vrot.slane %v343, 4
        %v348 = vrot.slane %v344, 4
        %v351 = vsel %vm312, %v335, %v347
        %v352 = vsel %vm312, %v336, %v348
        %s353 = scalar_lea.vmem [#allocation7], 2
        %v354 = vld [vmem:[%s353] ss:$8 sm:$0x3]
        %355 = vrot.lane.b32.xlu0 %v267, 15
        %v356 = vpop.permute.xlu0 %355
        %357 = vrot.lane.b32.xlu0 %v271, 15
        %v358 = vpop.permute.xlu0 %357
        %vm359 = vcmp.lt.s32.totalorder %v278, 15
        %v360 = vsel %vm359, %v356, %v358
        %v361 = vsel %vm359, %v358, %v356
        %v363 = vlaneseq
        %v364 = vshrl.u32 %v363, 7
        %v365 = vsub.s32 0, %v364
        %v366 = vrot.slane %v354, %v365
        %v367 = vlaneseq
        %v368 = vshrl.u32 %v367, 7
        %v369 = vsub.s32 1, %v368
        %v370 = vrot.slane %v354, %v369
        %v373 = vmul.f32 %v361, %v366
        %v374 = vmul.f32 %v360, %v370
        %375 = vrot.lane.b32.xlu0 %v268, 15
        %v376 = vpop.permute.xlu0 %375
        %377 = vrot.lane.b32.xlu0 %v296, 15
        %v378 = vpop.permute.xlu0 %377
        %v379 = vsel %vm359, %v376, %v378
        %v380 = vsel %vm359, %v378, %v376
        %v381 = vmul.f32 %v380, %v366
        %v382 = vmul.f32 %v379, %v370
        %v385 = vrot.slane %v381, 4
        %v386 = vrot.slane %v382, 4
        %v389 = vsel %vm312, %v373, %v385
        %v390 = vsel %vm312, %v374, %v386
        %s391 = scalar_lea.vmem [#allocation7], 3
        %v392 = vld [vmem:[%s391] ss:$8 sm:$0x3]
        %393 = vrot.lane.b32.xlu0 %v267, 1
        %v394 = vpop.permute.xlu0 %393
        %395 = vrot.lane.b32.xlu0 %v271, 1
        %v396 = vpop.permute.xlu0 %395
        %vm397 = vcmp.lt.s32.totalorder %v278, 1
        %v398 = vsel %vm397, %v394, %v396
        %v399 = vsel %vm397, %v396, %v394
        %v401 = vlaneseq
        %v402 = vshrl.u32 %v401, 7
        %v403 = vsub.s32 0, %v402
        %v404 = vrot.slane %v392, %v403
        %v405 = vlaneseq
        %v406 = vshrl.u32 %v405, 7
        %v407 = vsub.s32 1, %v406
        %v408 = vrot.slane %v392, %v407
        %v411 = vmul.f32 %v399, %v404
        %v412 = vmul.f32 %v398, %v408
        %413 = vrot.lane.b32.xlu0 %v268, 1
        %v414 = vpop.permute.xlu0 %413
        %415 = vrot.lane.b32.xlu0 %v296, 1
        %v416 = vpop.permute.xlu0 %415
        %v417 = vsel %vm397, %v414, %v416
        %v418 = vsel %vm397, %v416, %v414
        %v419 = vmul.f32 %v418, %v404
        %v420 = vmul.f32 %v417, %v408
        %v423 = vrot.slane %v419, 4
        %v424 = vrot.slane %v420, 4
        %v427 = vsel %vm312, %v411, %v423
        %v428 = vsel %vm312, %v412, %v424
        %v429 = vcombine.low %v268, %v268
        %v431 = vsel %vm312, %v267, %v429
        %v432 = vsel %vm312, %v271, %v268
        %s433 = scalar_lea.vmem [#allocation7], 5
        %v434 = vld [vmem:[%s433] ss:$8 sm:$0x3]
        %435 = vrot.lane.b32.xlu0 %v267, 127
        %v436 = vpop.permute.xlu0 %435
        %437 = vrot.lane.b32.xlu0 %v271, 127
        %v438 = vpop.permute.xlu0 %437
        %vm439 = vcmp.lt.s32.totalorder %v278, 127
        %v440 = vsel %vm439, %v436, %v438
        %v441 = vsel %vm439, %v438, %v436
        %v443 = vlaneseq
        %v444 = vshrl.u32 %v443, 7
        %v445 = vsub.s32 0, %v444
        %v446 = vrot.slane %v434, %v445
        %v447 = vlaneseq
        %v448 = vshrl.u32 %v447, 7
        %v449 = vsub.s32 1, %v448
        %v450 = vrot.slane %v434, %v449
        %v453 = vmul.f32 %v440, %v446
        %v454 = vmul.f32 %v441, %v450
        %455 = vrot.lane.b32.xlu0 %v268, 127
        %v456 = vpop.permute.xlu0 %455
        %457 = vrot.lane.b32.xlu0 %v296, 127
        %v458 = vpop.permute.xlu0 %457
        %v459 = vsel %vm439, %v456, %v458
        %v460 = vsel %vm439, %v458, %v456
        %v461 = vmul.f32 %v459, %v446
        %v462 = vmul.f32 %v460, %v450
        %v465 = vrot.slane %v461, 4
        %v466 = vrot.slane %v462, 4
        %v469 = vsel %vm312, %v453, %v465
        %v470 = vsel %vm312, %v454, %v466
        %s471 = scalar_lea.vmem [#allocation7], 6
        %v472 = vld [vmem:[%s471] ss:$8 sm:$0x3]
        %473 = vrot.lane.b32.xlu0 %v267, 113
        %v474 = vpop.permute.xlu0 %473
        %475 = vrot.lane.b32.xlu0 %v271, 113
        %v476 = vpop.permute.xlu0 %475
        %vm477 = vcmp.lt.s32.totalorder %v278, 113
        %v478 = vsel %vm477, %v474, %v476
        %v479 = vsel %vm477, %v476, %v474
        %v481 = vlaneseq
        %v482 = vshrl.u32 %v481, 7
        %v483 = vsub.s32 0, %v482
        %v484 = vrot.slane %v472, %v483
        %v485 = vlaneseq
        %v486 = vshrl.u32 %v485, 7
        %v487 = vsub.s32 1, %v486
        %v488 = vrot.slane %v472, %v487
        %v491 = vmul.f32 %v478, %v484
        %v492 = vmul.f32 %v479, %v488
        %493 = vrot.lane.b32.xlu0 %v268, 113
        %v494 = vpop.permute.xlu0 %493
        %495 = vrot.lane.b32.xlu0 %v296, 113
        %v496 = vpop.permute.xlu0 %495
        %v497 = vsel %vm477, %v494, %v496
        %v498 = vsel %vm477, %v496, %v494
        %v499 = vmul.f32 %v497, %v484
        %v500 = vmul.f32 %v498, %v488
        %v503 = vrot.slane %v499, 4
        %v504 = vrot.slane %v500, 4
        %v507 = vsel %vm312, %v491, %v503
        %v508 = vsel %vm312, %v492, %v504
        %s509 = scalar_lea.vmem [#allocation7], 7
        %v510 = vld [vmem:[%s509] ss:$8 sm:$0x3]
        %511 = vrot.lane.b32.xlu0 %v267, 112
        %v512 = vpop.permute.xlu0 %511
        %513 = vrot.lane.b32.xlu0 %v271, 112
        %v514 = vpop.permute.xlu0 %513
        %vm515 = vcmp.lt.s32.totalorder %v278, 112
        %v516 = vsel %vm515, %v512, %v514
        %v517 = vsel %vm515, %v514, %v512
        %v519 = vlaneseq
        %v520 = vshrl.u32 %v519, 7
        %v521 = vsub.s32 0, %v520
        %v522 = vrot.slane %v510, %v521
        %v523 = vlaneseq
        %v524 = vshrl.u32 %v523, 7
        %v525 = vsub.s32 1, %v524
        %v526 = vrot.slane %v510, %v525
        %v529 = vmul.f32 %v516, %v522
        %v530 = vmul.f32 %v517, %v526
        %531 = vrot.lane.b32.xlu0 %v268, 112
        %v532 = vpop.permute.xlu0 %531
        %533 = vrot.lane.b32.xlu0 %v296, 112
        %v534 = vpop.permute.xlu0 %533
        %v535 = vsel %vm515, %v532, %v534
        %v536 = vsel %vm515, %v534, %v532
        %v537 = vmul.f32 %v535, %v522
        %v538 = vmul.f32 %v536, %v526
        %v541 = vrot.slane %v537, 4
        %v542 = vrot.slane %v538, 4
        %v545 = vsel %vm312, %v529, %v541
        %v546 = vsel %vm312, %v530, %v542
        %s547 = scalar_lea.vmem [#allocation7], 16
        %v548 = vld [vmem:[%s547] ss:$8 sm:$0x3]
        %549 = vrot.lane.b32.xlu0 %v267, 111
        %v550 = vpop.permute.xlu0 %549
        %551 = vrot.lane.b32.xlu0 %v271, 111
        %v552 = vpop.permute.xlu0 %551
        %vm553 = vcmp.lt.s32.totalorder %v278, 111
        %v554 = vsel %vm553, %v550, %v552
        %v555 = vsel %vm553, %v552, %v550
        %v557 = vlaneseq
        %v558 = vshrl.u32 %v557, 7
        %v559 = vsub.s32 0, %v558
        %v560 = vrot.slane %v548, %v559
        %v561 = vlaneseq
        %v562 = vshrl.u32 %v561, 7
        %v563 = vsub.s32 1, %v562
        %v564 = vrot.slane %v548, %v563
        %v567 = vmul.f32 %v554, %v560
        %v568 = vmul.f32 %v555, %v564
        %569 = vrot.lane.b32.xlu0 %v268, 111
        %v570 = vpop.permute.xlu0 %569
        %571 = vrot.lane.b32.xlu0 %v296, 111
        %v572 = vpop.permute.xlu0 %571
        %v573 = vsel %vm553, %v570, %v572
        %v574 = vsel %vm553, %v572, %v570
        %v575 = vmul.f32 %v573, %v560
        %v576 = vmul.f32 %v574, %v564
        %v579 = vrot.slane %v575, 4
        %v580 = vrot.slane %v576, 4
        %v583 = vsel %vm312, %v567, %v579
        %v584 = vsel %vm312, %v568, %v580
        %v585 = vld [vmem:[%s2] sm:$0x3]
        %v586 = vpack.c.bf16 %v351, %v313
        %v587 = vpack.c.bf16 %v352, %v314
        %v588 = vpack.c.bf16 %v427, %v389
        %v589 = vpack.c.bf16 %v428, %v390
        %v590 = vpack.c.bf16 %v469, %v431
        %v591 = vpack.c.bf16 %v470, %v432
        %v592 = vpack.c.bf16 %v545, %v507
        %v593 = vpack.c.bf16 %v546, %v508
        %v594 = vpack.c.bf16 1.0, %v583
        %v595 = vpack.c.bf16 1.0, %v584
        %vm596 = vcmask 596992
        %v598 = vsel %vm596, %v585, 0
        %vm600 = vcmask 1044480
        %v601 = vsel %vm312, 4294967295, 65535
        %v602 = vsel %vm600, %v601, 0
        %v604 = vand.u32 %v594, %v602
        %v607 = vand.u32 %v595, %v602
        %609 = vmatprep.subr.bf16.mxu0 %v587
        %610 = vmatpush1.bf16.msra.mxu0 %v586
        %611 = vmatprep.subr.bf16.mxu0 %v589
        %612 = vmatpush1.bf16.msra.mxu0 %v588
        %613 = vmatprep.subr.bf16.mxu0 %v591
        %614 = vmatpush1.bf16.msra.mxu0 %v590
        %615 = vmatprep.subr.bf16.mxu0 %v593
        %616 = vmatpush1.bf16.msra.mxu0 %v592
        %617 = vmatprep.subr.bf16.mxu0 %v607
        %618 = vmatpush1.bf16.msra.mxu0 %v604
        %619 = vmatprep.subr.bf16.mxu0 0
        %620 = vmatpush1.bf16.msra.mxu0 0
        %621 = vmatprep.subr.bf16.mxu0 0
        %622 = vmatpush1.bf16.msra.mxu0 0
        %623 = vmatprep.subr.bf16.mxu0 0
        %624 = vmatpush1.bf16.msra.mxu0 0
        %625 = vmatprep.subr.bf16.mxu0 0
        %626 = vmatpush1.bf16.msra.mxu0 0
        %627 = vmatprep.subr.bf16.mxu0 0
        %628 = vmatpush1.bf16.msra.mxu0 0
        %629 = vmatprep.subr.bf16.mxu0 0
        %630 = vmatpush1.bf16.msra.mxu0 0
        %631 = vmatprep.subr.bf16.mxu0 0
        %632 = vmatpush1.bf16.msra.mxu0 0
        %633 = vmatprep.subr.bf16.mxu0 0
        %634 = vmatpush1.bf16.msra.mxu0 0
        %635 = vmatprep.subr.bf16.mxu0 0
        %636 = vmatpush1.bf16.msra.mxu0 0
        %637 = vmatprep.subr.bf16.mxu0 0
        %638 = vmatpush1.bf16.msra.mxu0 0
        %639 = vmatprep.subr.bf16.mxu0 0
        %640 = vmatpush1.bf16.msra.mxu0 0
        %641 = vmatprep.mubr.bf16.mxu0 0
        %642 = vmatmul.mubr.bf16.gmra.mrb[0].mxu0 %v598
        %v643 = vpop.f32.mrb[0].mxu0
        %v644 = vadd.f32 0.0, %v643
        %v645 = vpop.f32.mrb[0].mxu0
        %v646 = vadd.f32 0.0, %v645
        %v647 = vpop.f32.mrb[0].mxu0
        %v648 = vpop.f32.mrb[0].mxu0
        %649 = vdwg.mxu0
        %v650 = vmax.f32 %v644, 0.0
        %v651 = vmax.f32 %v646, 0.0
        %v654 = vcombine.low %v650, %v651
        %656 = vst [vmem:[%s265] sm:$0xff] %v654
        %s657 = sand.u32 %s126, 1
        %s658 = scalar_lea.sflag [#allocation4], %s657
        %s659 = sand.u32 %s126, 1
        %s660 = smul.addr %s659, 8
        %s661 = scalar_lea.vmem [#allocation8], %s660
        // Predicated region
        $region49: #{tpu_custom_call.1} parent=35 // pred_check
          %p662 = pneg %p136
        $region50: #{tpu_custom_call.1} parent=35 // pred_check_branch
          %664 = sbr.rel (%p662) target = $region52
        $region51: #{tpu_custom_call.1} parent=35 // pred_region
          %s666 = ssub.s32 128, 128
          %667 = vsyncadd %s658, %s666
          %s668 = smul.addr %s24, 2
          %s669 = smul.addr %s668, 64
          %s670 = scalar_lea.hbm %s4, %s669
          %s672 = sshll.u32 %s661, 4
          %s673 = int_to_ptr.vmem [resolvable:$true] %s672
          %675 = dma.vmem_to_hbm [thread:$0]  %s673, 128, %s670, %s658
        $region52: #{tpu_custom_call.1} parent=35 // pred_fallthru
          _
      $region36: #{tpu_custom_call.1} parent=5 // pred_fallthru
        _
      %p676 = scmp.le.s32.totalorder 2, %s19
      // Predicated region
      $region53: #{tpu_custom_call.1} parent=5 // pred_check
        %p677 = pneg %p676
      $region54: #{tpu_custom_call.1} parent=5 // pred_check_branch
        %679 = sbr.rel (%p677) target = $region56
      $region55: #{tpu_custom_call.1} parent=5 // pred_region
        %s680 = ssub.s32 %s19, 2
        // Predicated region
        $region57: #{tpu_custom_call.1} parent=55 // pred_check
          %p681 = pneg %p142
        $region58: #{tpu_custom_call.1} parent=55 // pred_check_branch
          %683 = sbr.rel (%p681) target = $region60
        $region59: #{tpu_custom_call.1} parent=55 // pred_region
          %s684 = sand.u32 %s127, 1
          %s685 = scalar_lea.sflag [#allocation4], %s684
          %s686 = sand.u32 %s127, 1
          %s687 = smul.addr %s686, 8
          %s688 = scalar_lea.vmem [#allocation8], %s687
          %689 = dma.done %s685, 128
        $region60: #{tpu_custom_call.1} parent=55 // pred_fallthru
          _
      $region56: #{tpu_custom_call.1} parent=5 // pred_fallthru
        _
    $region6: #{tpu_custom_call.1} parent=1 // loop_footer
      %s23 = sadd.s32 1, %s19
    $region7: #{tpu_custom_call.1} parent=1 // loop_footer_branch
      %18 = sbr.rel target = $region3
    $region8: #{tpu_custom_call.1} parent=1 // loop_exit
      _
    %690 = vsyncpa [#allocation3], 1
    %s691 = scalar_lea.sflag [#allocation3], 1
    %692 = vsyncpa %s691, 1
    %693 = vsyncpa [#allocation6], 1
    %s694 = scalar_lea.sflag [#allocation6], 1
    %695 = vsyncpa %s694, 1
    %696 = vsyncpa [#allocation4], 1
    %s697 = scalar_lea.sflag [#allocation4], 1
    %698 = vsyncpa %s697, 1

</llo_original>
